<compile_context>
chip_gen: v7x
topology: tpu7x:2x2x1
jax: 0.10.0
libtpu: 0.0.40
codegen_flags: <defaults>
</compile_context>

<pallas_src>
import jax
import jax.numpy as jnp
from jax.experimental import pallas as pl
from jax.experimental.pallas import tpu as pltpu


def _round_up(x, m):
    return ((x + m - 1) // m) * m


def policy_net_kernel(x_ref, w1_ref, b1_ref, w2_ref, b2_ref, o_ref):
    # Cast activations to bf16 in-kernel (VPU cast hides under the x DMA).
    x = x_ref[...].astype(jnp.bfloat16)
    # fc1: bf16 x bf16 -> f32 MXU accumulation, + bias, ReLU.
    h = jnp.dot(x, w1_ref[...], preferred_element_type=jnp.float32)
    h = jnp.maximum(h + b1_ref[...], 0.0)
    # fc2 over the lane-padded (128-wide) logits.  Padded W2 columns are zero
    # and padded b2 lanes are -1e30, so exp() of those lanes is exactly 0 and
    # the softmax matches the unpadded one.
    logits = jnp.dot(h.astype(jnp.bfloat16), w2_ref[...],
                     preferred_element_type=jnp.float32) + b2_ref[...]
    # Numerically-stable softmax along the feature axis (dim=1).  Exact divide
    # so each row sums to 1 at f32 precision (safe for categorical sampling).
    m = jnp.max(logits, axis=1, keepdims=True)
    e = jnp.exp(logits - m)
    denom = jnp.sum(e, axis=1, keepdims=True)
    o_ref[...] = (e / denom).astype(o_ref.dtype)


def policy_net_forward(x, w1, b1, w2, b2, *, tb=None):
    """PolicyNet forward: softmax(relu(x @ w1 + b1) @ w2 + b2, axis=1).

    x : (B, input_size) f32        (cast to bf16 inside the kernel)
    w1: (input_size, 128) bf16     b1: (1, 128) f32
    w2: (128, action_size) bf16    b2: (1, action_size) f32
    Returns (B, action_size) f32 probabilities.
    """
    B, in_features = x.shape
    hidden = w1.shape[1]
    action_size = w2.shape[1]

    # ---- lane-dense output: pad the action axis up to a multiple of 128 ----
    # (Weights are tiny; for repeated calls pre-pad once at init time.)
    act_pad = _round_up(action_size, 128)
    if act_pad != action_size:
        w2 = jnp.pad(w2, ((0, 0), (0, act_pad - action_size)))
        b2 = jnp.pad(b2, ((0, 0), (0, act_pad - action_size)),
                     constant_values=-1e30)

    # ---- batch tiling -------------------------------------------------------
    # Each grid step costs ~0.35us of pipeline overhead, so on single-TC chips
    # (v5e/v6e) we want few, large tiles; per-tile VMEM is tiny (x: tb*in*4 B,
    # out: tb*128*4 B, double-buffered) so even tb=4096 is far under the 32 MiB
    # scoped / 64 MiB physical VMEM on v7x.  On v7x, pass tb so the grid has an
    # even number of tiles to let the "parallel" batch axis shard across the
    # 2 TensorCores.
    if tb is None:
        tb = 4096
    tb_eff = max(8, min(_round_up(tb, 8), _round_up(B, 8)))
    num_tiles = pl.cdiv(B, tb_eff)
    b_out = num_tiles * tb_eff          # out rows = whole number of tiles

    itemsize = lambda a: a.dtype.itemsize
    flops = 2 * B * (in_features * hidden + hidden * act_pad)
    bytes_accessed = (x.size * itemsize(x) + w1.size * itemsize(w1)
                      + b1.size * itemsize(b1) + w2.size * itemsize(w2)
                      + b2.size * itemsize(b2) + b_out * act_pad * 4)

    out = pl.pallas_call(
        policy_net_kernel,
        out_shape=jax.ShapeDtypeStruct((b_out, act_pad), jnp.float32),
        grid=(num_tiles,),
        in_specs=[
            # x: tiled over the batch, auto double-buffered.  A ragged last
            # tile is fine: softmax is row-wise and padded rows are sliced off.
            pl.BlockSpec((tb_eff, in_features), lambda i: (i, 0)),
            # weights / biases: constant index_map -> loaded once, VMEM-resident.
            pl.BlockSpec((in_features, hidden), lambda i: (0, 0)),
            pl.BlockSpec((1, hidden), lambda i: (0, 0)),
            pl.BlockSpec((hidden, act_pad), lambda i: (0, 0)),
            pl.BlockSpec((1, act_pad), lambda i: (0, 0)),
        ],
        out_specs=pl.BlockSpec((tb_eff, act_pad), lambda i: (i, 0)),
        compiler_params=pltpu.CompilerParams(
            dimension_semantics=("parallel",),
        ),
        cost_estimate=pl.CostEstimate(
            flops=flops,
            transcendentals=B * act_pad,
            bytes_accessed=bytes_accessed,
        ),
    )(x, w1, b1, w2, b2)

    return out[:B, :action_size]


def init_params(key, input_size, hidden, action_size):
    # Mimic torch nn.Linear default init: U(-1/sqrt(fan_in), 1/sqrt(fan_in)).
    k1, k2, k3, k4 = jax.random.split(key, 4)
    bound1 = 1.0 / jnp.sqrt(input_size)
    bound2 = 1.0 / jnp.sqrt(hidden)
    w1 = jax.random.uniform(k1, (input_size, hidden), jnp.float32, -bound1, bound1)
    b1 = jax.random.uniform(k2, (1, hidden), jnp.float32, -bound1, bound1)
    w2 = jax.random.uniform(k3, (hidden, action_size), jnp.float32, -bound2, bound2)
    b2 = jax.random.uniform(k4, (1, action_size), jnp.float32, -bound2, bound2)
    # GEMM operands stored in bf16 (MXU-native); biases stay f32.
    return w1.astype(jnp.bfloat16), b1, w2.astype(jnp.bfloat16), b2


if __name__ == "__main__":
    B, input_size, hidden, action_size = 256, 32, 128, 8

    key = jax.random.PRNGKey(0)
    kx, kp = jax.random.split(key)
    x = jax.random.normal(kx, (B, input_size), jnp.float32)
    w1, b1, w2, b2 = init_params(kp, input_size, hidden, action_size)

    # tb=128 -> grid of 2 batch tiles (exercises the pipelined / megacore path).
    out = policy_net_forward(x, w1, b1, w2, b2, tb=128)
    out = jax.block_until_ready(out)

    # Plain-JAX reference with matching bf16 GEMM / f32-accumulate precision.
    h_ref = jnp.maximum(
        jnp.dot(x.astype(jnp.bfloat16), w1, preferred_element_type=jnp.float32) + b1,
        0.0,
    )
    logits_ref = jnp.dot(h_ref.astype(jnp.bfloat16), w2,
                         preferred_element_type=jnp.float32) + b2
    ref = jax.nn.softmax(logits_ref, axis=1)

    assert out.shape == (B, action_size)
    assert jnp.allclose(out, ref, atol=2e-3, rtol=2e-3)
    # Exact divide in-kernel -> rows sum to 1 at f32 precision.
    assert jnp.allclose(jnp.sum(out, axis=1), 1.0, atol=1e-3)

    print("KERNEL_OK")
</pallas_src>

<mosaic_0001>
module attributes {stable_mosaic.version = 11 : i64} {
  func.func @policy_net_kernel(%arg0: i32, %arg1: memref<128x32xf32, #tpu.memory_space<vmem>>, %arg2: memref<32x128xbf16, #tpu.memory_space<vmem>>, %arg3: memref<1x128xf32, #tpu.memory_space<vmem>>, %arg4: memref<128x128xbf16, #tpu.memory_space<vmem>>, %arg5: memref<1x128xf32, #tpu.memory_space<vmem>>, %arg6: memref<128x128xf32, #tpu.memory_space<vmem>>) attributes {dimension_semantics = [#tpu.dimension_semantics<parallel>], iteration_bounds = array<i64: 2>, scalar_prefetch = 0 : i64, scratch_operands = 0 : i64, tpu.core_type = #tpu.core_type<tc>, window_params = [{transform_indices = @transform_0, window_bounds = array<i64: 128, 32>}, {pipeline_mode = #tpu.pipeline_mode<synchronous>, transform_indices = @transform_1, window_bounds = array<i64: 32, 128>}, {pipeline_mode = #tpu.pipeline_mode<synchronous>, transform_indices = @transform_2, window_bounds = array<i64: 1, 128>}, {pipeline_mode = #tpu.pipeline_mode<synchronous>, transform_indices = @transform_3, window_bounds = array<i64: 128, 128>}, {pipeline_mode = #tpu.pipeline_mode<synchronous>, transform_indices = @transform_4, window_bounds = array<i64: 1, 128>}, {transform_indices = @transform_5, window_bounds = array<i64: 128, 128>}]} {
    %c0 = arith.constant 0 : index
    %c0_0 = arith.constant 0 : index
    %0 = vector.load %arg1[%c0, %c0_0] : memref<128x32xf32, #tpu.memory_space<vmem>>, vector<128x32xf32>
    %1 = arith.truncf %0 : vector<128x32xf32> to vector<128x32xbf16>
    %c0_1 = arith.constant 0 : index
    %c0_2 = arith.constant 0 : index
    %2 = vector.load %arg2[%c0_1, %c0_2] : memref<32x128xbf16, #tpu.memory_space<vmem>>, vector<32x128xbf16>
    %cst = arith.constant dense<0.000000e+00> : vector<128x128xf32>
    %3 = tpu.matmul %1, %2, %cst {dimension_numbers = #tpu.dot_dimension_numbers<[1], [0], [0], [1], [0, 0, 1, 1], [], []>} : vector<128x32xbf16>, vector<32x128xbf16>, vector<128x128xf32> -> vector<128x128xf32>
    %c0_3 = arith.constant 0 : index
    %c0_4 = arith.constant 0 : index
    %4 = vector.load %arg3[%c0_3, %c0_4] : memref<1x128xf32, #tpu.memory_space<vmem>>, vector<1x128xf32>
    %5 = vector.broadcast %4 : vector<1x128xf32> to vector<128x128xf32>
    %6 = arith.addf %3, %5 : vector<128x128xf32>
    %cst_5 = arith.constant 0.000000e+00 : f32
    %7 = vector.broadcast %cst_5 : f32 to vector<128x128xf32>
    %8 = arith.maximumf %6, %7 : vector<128x128xf32>
    %9 = arith.truncf %8 : vector<128x128xf32> to vector<128x128xbf16>
    %c0_6 = arith.constant 0 : index
    %c0_7 = arith.constant 0 : index
    %10 = vector.load %arg4[%c0_6, %c0_7] : memref<128x128xbf16, #tpu.memory_space<vmem>>, vector<128x128xbf16>
    %cst_8 = arith.constant dense<0.000000e+00> : vector<128x128xf32>
    %11 = tpu.matmul %9, %10, %cst_8 {dimension_numbers = #tpu.dot_dimension_numbers<[1], [0], [0], [1], [0, 0, 1, 1], [], []>} : vector<128x128xbf16>, vector<128x128xbf16>, vector<128x128xf32> -> vector<128x128xf32>
    %c0_9 = arith.constant 0 : index
    %c0_10 = arith.constant 0 : index
    %12 = vector.load %arg5[%c0_9, %c0_10] : memref<1x128xf32, #tpu.memory_space<vmem>>, vector<1x128xf32>
    %13 = vector.broadcast %12 : vector<1x128xf32> to vector<128x128xf32>
    %14 = arith.addf %11, %13 : vector<128x128xf32>
    %cst_11 = arith.constant dense<0xFF800000> : vector<128xf32>
    %15 = vector.multi_reduction <maximumf>, %14, %cst_11 [1] : vector<128x128xf32> to vector<128xf32>
    %16 = vector.shape_cast %15 : vector<128xf32> to vector<128x1xf32>
    %17 = vector.broadcast %16 : vector<128x1xf32> to vector<128x128xf32>
    %18 = arith.subf %14, %17 : vector<128x128xf32>
    %19 = math.exp %18 : vector<128x128xf32>
    %cst_12 = arith.constant dense<0.000000e+00> : vector<128xf32>
    %20 = vector.multi_reduction <add>, %19, %cst_12 [1] : vector<128x128xf32> to vector<128xf32>
    %21 = vector.shape_cast %20 : vector<128xf32> to vector<128x1xf32>
    %22 = vector.broadcast %21 : vector<128x1xf32> to vector<128x128xf32>
    %23 = arith.divf %19, %22 : vector<128x128xf32>
    %c0_13 = arith.constant 0 : index
    %c0_14 = arith.constant 0 : index
    %24 = vector.load %arg6[%c0_13, %c0_14] : memref<128x128xf32, #tpu.memory_space<vmem>>, vector<128x128xf32>
    tpu.vector_store %arg6[%c0_13, %c0_14], %23 {strides = array<i32>} : memref<128x128xf32, #tpu.memory_space<vmem>>, vector<128x128xf32>,
    return
  }
  func.func @transform_0(%arg0: i32) -> (i32, i32) {
    %c0_i32 = arith.constant 0 : i32
    %c0_i32_0 = arith.constant 0 : i32
    return %arg0, %c0_i32 : i32, i32
  }
  func.func @transform_1(%arg0: i32) -> (i32, i32) {
    %c0_i32 = arith.constant 0 : i32
    %c0_i32_0 = arith.constant 0 : i32
    %c0_i32_1 = arith.constant 0 : i32
    return %c0_i32, %c0_i32_0 : i32, i32
  }
  func.func @transform_2(%arg0: i32) -> (i32, i32) {
    %c0_i32 = arith.constant 0 : i32
    %c0_i32_0 = arith.constant 0 : i32
    %c0_i32_1 = arith.constant 0 : i32
    return %c0_i32, %c0_i32_0 : i32, i32
  }
  func.func @transform_3(%arg0: i32) -> (i32, i32) {
    %c0_i32 = arith.constant 0 : i32
    %c0_i32_0 = arith.constant 0 : i32
    %c0_i32_1 = arith.constant 0 : i32
    return %c0_i32, %c0_i32_0 : i32, i32
  }
  func.func @transform_4(%arg0: i32) -> (i32, i32) {
    %c0_i32 = arith.constant 0 : i32
    %c0_i32_0 = arith.constant 0 : i32
    %c0_i32_1 = arith.constant 0 : i32
    return %c0_i32, %c0_i32_0 : i32, i32
  }
  func.func @transform_5(%arg0: i32) -> (i32, i32) {
    %c0_i32 = arith.constant 0 : i32
    %c0_i32_0 = arith.constant 0 : i32
    return %arg0, %c0_i32 : i32, i32
  }
}

</mosaic_0001>

<llo_original>
// kernel: tpu_custom_call.1
$region0: #{tpu_custom_call.1}
  #allocation0 [shape = 'u32[]', space=smem, size = 0x4, offset = 0x4, fixed_abs, tag = 'smem constant byte address 0x4 - core index']
  #allocation1 [shape = 'u32[144,128]{1,0:T(1,128)}', space=vmem, size = 0x12000, scoped, tag = 'internal scratch']
  %s0 = inlined_call_operand.vmem [shape: f32[256,32], index: 0, kind: input, shape index: {}]
  %s1 = inlined_call_operand.vmem [shape: bf16[32,128], index: 1, kind: input, shape index: {}]
  %s2 = inlined_call_operand.vmem [shape: f32[1,128], index: 2, kind: input, shape index: {}]
  %s3 = inlined_call_operand.vmem [shape: bf16[128,128], index: 3, kind: input, shape index: {}]
  %s4 = inlined_call_operand.vmem [shape: f32[1,128], index: 4, kind: input, shape index: {}]
  %s5 = inlined_call_operand.hbm [shape: f32[256,128], index: 5, kind: output, shape index: {}]
  %s6 = sld [smem:[#allocation0]]
  $region53: #{tpu_custom_call.1} parent=0
    _
  %s8 = ssub.s32 1, %s6
  %s9 = scalar_select 0, %s8, %s6
  $region1: #{tpu_custom_call.1} parent=0
    #allocation2 [shape = 'u8[131072]{0}', space=vmem, size = 0x20000, scoped, tag = 'output window, operand 0']
    #allocation3 [shape = 's32[2]{0}', space=sflag, size = 0x8, scoped, tag = 'scoped memory for tpu_custom_call.1']
    %10 = vsyncpa [#allocation3], 0
    %s11 = scalar_lea.sflag [#allocation3], 1
    %12 = vsyncpa %s11, 0
    loop: start=0, step=1, limit=4
    $region2: #{tpu_custom_call.1} parent=1 // loop_pre_header
      _
    $region3: #{tpu_custom_call.1} parent=1 // loop_header
      %s14 = sphi 0, %s18
      %p15 = scmp.ge.s32.totalorder %s14, 4
      %s24 = sphi 0, %s26
      %s27 = sphi 0, %s24
      %s28 = sphi 0, %s27
      %s44 = sphi 0, %s28
      %s48 = sphi 0, %s48
      %s50 = sphi 0, %s48
      %s51 = sphi 0, %s50
      %s65 = sphi 0, %s51
      %s69 = sphi 0, %s69
      %s71 = sphi 0, %s69
      %s72 = sphi 0, %s71
      %s86 = sphi 0, %s72
      %s90 = sphi 0, %s90
      %s92 = sphi 0, %s90
      %s93 = sphi 0, %s92
      %s107 = sphi 0, %s93
      %s111 = sphi 0, %s111
      %s113 = sphi 0, %s111
      %s114 = sphi 0, %s113
      %s128 = sphi 0, %s114
      %s134 = sphi 0, %s136
      %s137 = sphi 0, %s134
      %s138 = sphi 0, %s137
      %s154 = sphi 0, %s138
    $region4: #{tpu_custom_call.1} parent=1 // loop_header_branch
      %17 = sbr.rel (%p15) target = $region8
    $region5: #{tpu_custom_call.1} parent=1 // loop_body
      %s19 = ssub.s32 %s14, 1
      %s20 = ssub.s32 %s14, 2
      %s21 = sadd.s32 %s14, 1
      %s22 = ssub.s32 %s14, %s21
      %p23 = scmp.eq.s32.totalorder %s22, 0
      %s25 = sadd.s32 %s24, 1
      %s26 = scalar_select %p23, %s24, %s25
      %p29 = pneg %p23
      %p30 = scmp.eq.s32.totalorder %s14, 1
      %p31 = por %p29, %p30
      %p32 = scmp.ne.s32.totalorder %s24, %s27
      %p33 = scmp.eq.s32.totalorder %s14, 0
      %p34 = por %p32, %p33
      %p35 = scmp.ne.s32.totalorder %s24, %s27
      %p36 = scmp.eq.s32.totalorder %s19, 1
      %p37 = por %p35, %p36
      %p38 = scmp.ne.s32.totalorder %s27, %s28
      %p39 = scmp.eq.s32.totalorder %s19, 0
      %p40 = por %p38, %p39
      %p41 = scmp.ne.s32.totalorder %s27, %s28
      %p42 = scmp.eq.s32.totalorder %s20, 1
      %p43 = por %p41, %p42
      %p45 = scmp.ne.s32.totalorder %s28, %s44
      %p46 = scmp.eq.s32.totalorder %s20, 0
      %p47 = por %p45, %p46
      %s49 = sadd.s32 %s48, 1
      %p52 = scmp.eq.s32.totalorder %s14, 1
      %p53 = scmp.ne.s32.totalorder %s48, %s50
      %p54 = scmp.eq.s32.totalorder %s14, 0
      %p55 = por %p53, %p54
      %p56 = scmp.ne.s32.totalorder %s48, %s50
      %p57 = scmp.eq.s32.totalorder %s19, 1
      %p58 = por %p56, %p57
      %p59 = scmp.ne.s32.totalorder %s50, %s51
      %p60 = scmp.eq.s32.totalorder %s19, 0
      %p61 = por %p59, %p60
      %p62 = scmp.ne.s32.totalorder %s50, %s51
      %p63 = scmp.eq.s32.totalorder %s20, 1
      %p64 = por %p62, %p63
      %p66 = scmp.ne.s32.totalorder %s51, %s65
      %p67 = scmp.eq.s32.totalorder %s20, 0
      %p68 = por %p66, %p67
      %s70 = sadd.s32 %s69, 1
      %p73 = scmp.eq.s32.totalorder %s14, 1
      %p74 = scmp.ne.s32.totalorder %s69, %s71
      %p75 = scmp.eq.s32.totalorder %s14, 0
      %p76 = por %p74, %p75
      %p77 = scmp.ne.s32.totalorder %s69, %s71
      %p78 = scmp.eq.s32.totalorder %s19, 1
      %p79 = por %p77, %p78
      %p80 = scmp.ne.s32.totalorder %s71, %s72
      %p81 = scmp.eq.s32.totalorder %s19, 0
      %p82 = por %p80, %p81
      %p83 = scmp.ne.s32.totalorder %s71, %s72
      %p84 = scmp.eq.s32.totalorder %s20, 1
      %p85 = por %p83, %p84
      %p87 = scmp.ne.s32.totalorder %s72, %s86
      %p88 = scmp.eq.s32.totalorder %s20, 0
      %p89 = por %p87, %p88
      %s91 = sadd.s32 %s90, 1
      %p94 = scmp.eq.s32.totalorder %s14, 1
      %p95 = scmp.ne.s32.totalorder %s90, %s92
      %p96 = scmp.eq.s32.totalorder %s14, 0
      %p97 = por %p95, %p96
      %p98 = scmp.ne.s32.totalorder %s90, %s92
      %p99 = scmp.eq.s32.totalorder %s19, 1
      %p100 = por %p98, %p99
      %p101 = scmp.ne.s32.totalorder %s92, %s93
      %p102 = scmp.eq.s32.totalorder %s19, 0
      %p103 = por %p101, %p102
      %p104 = scmp.ne.s32.totalorder %s92, %s93
      %p105 = scmp.eq.s32.totalorder %s20, 1
      %p106 = por %p104, %p105
      %p108 = scmp.ne.s32.totalorder %s93, %s107
      %p109 = scmp.eq.s32.totalorder %s20, 0
      %p110 = por %p108, %p109
      %s112 = sadd.s32 %s111, 1
      %p115 = scmp.eq.s32.totalorder %s14, 1
      %p116 = scmp.ne.s32.totalorder %s111, %s113
      %p117 = scmp.eq.s32.totalorder %s14, 0
      %p118 = por %p116, %p117
      %p119 = scmp.ne.s32.totalorder %s111, %s113
      %p120 = scmp.eq.s32.totalorder %s19, 1
      %p121 = por %p119, %p120
      %p122 = scmp.ne.s32.totalorder %s113, %s114
      %p123 = scmp.eq.s32.totalorder %s19, 0
      %p124 = por %p122, %p123
      %p125 = scmp.ne.s32.totalorder %s113, %s114
      %p126 = scmp.eq.s32.totalorder %s20, 1
      %p127 = por %p125, %p126
      %p129 = scmp.ne.s32.totalorder %s114, %s128
      %p130 = scmp.eq.s32.totalorder %s20, 0
      %p131 = por %p129, %p130
      %s132 = ssub.s32 %s14, %s21
      %p133 = scmp.eq.s32.totalorder %s132, 0
      %s135 = sadd.s32 %s134, 1
      %s136 = scalar_select %p133, %s134, %s135
      %p139 = pneg %p133
      %p140 = scmp.eq.s32.totalorder %s14, 1
      %p141 = por %p139, %p140
      %p142 = scmp.ne.s32.totalorder %s134, %s137
      %p143 = scmp.eq.s32.totalorder %s14, 0
      %p144 = por %p142, %p143
      %p145 = scmp.ne.s32.totalorder %s134, %s137
      %p146 = scmp.eq.s32.totalorder %s19, 1
      %p147 = por %p145, %p146
      %p148 = scmp.ne.s32.totalorder %s137, %s138
      %p149 = scmp.eq.s32.totalorder %s19, 0
      %p150 = por %p148, %p149
      %p151 = scmp.ne.s32.totalorder %s137, %s138
      %p152 = scmp.eq.s32.totalorder %s20, 1
      %p153 = por %p151, %p152
      %p155 = scmp.ne.s32.totalorder %s138, %s154
      %p156 = scmp.eq.s32.totalorder %s20, 0
      %p157 = por %p155, %p156
      %p158 = scmp.le.s32.totalorder 1, %s14
      %p159 = scmp.lt.s32.totalorder %s14, 3
      %p160 = pnand %p158, %p159
      %p161 = pneg %p160
      // Predicated region
      $region9: #{tpu_custom_call.1} parent=5 // pred_check
        _
      $region10: #{tpu_custom_call.1} parent=5 // pred_check_branch
        %163 = sbr.rel (%p160) target = $region12
      $region11: #{tpu_custom_call.1} parent=5 // pred_region
        %s164 = ssub.s32 %s14, 1
        // Predicated region
        $region13: #{tpu_custom_call.1} parent=11 // pred_check
          %p165 = pneg %p61
        $region14: #{tpu_custom_call.1} parent=11 // pred_check_branch
          %167 = sbr.rel (%p165) target = $region16
        $region15: #{tpu_custom_call.1} parent=11 // pred_region
          _
        $region16: #{tpu_custom_call.1} parent=11 // pred_fallthru
          _
        // Predicated region
        $region17: #{tpu_custom_call.1} parent=11 // pred_check
          %p168 = pneg %p82
        $region18: #{tpu_custom_call.1} parent=11 // pred_check_branch
          %170 = sbr.rel (%p168) target = $region20
        $region19: #{tpu_custom_call.1} parent=11 // pred_region
          _
        $region20: #{tpu_custom_call.1} parent=11 // pred_fallthru
          _
        // Predicated region
        $region21: #{tpu_custom_call.1} parent=11 // pred_check
          %p171 = pneg %p103
        $region22: #{tpu_custom_call.1} parent=11 // pred_check_branch
          %173 = sbr.rel (%p171) target = $region24
        $region23: #{tpu_custom_call.1} parent=11 // pred_region
          _
        $region24: #{tpu_custom_call.1} parent=11 // pred_fallthru
          _
        // Predicated region
        $region25: #{tpu_custom_call.1} parent=11 // pred_check
          %p174 = pneg %p124
        $region26: #{tpu_custom_call.1} parent=11 // pred_check_branch
          %176 = sbr.rel (%p174) target = $region28
        $region27: #{tpu_custom_call.1} parent=11 // pred_region
          _
        $region28: #{tpu_custom_call.1} parent=11 // pred_fallthru
          _
      $region12: #{tpu_custom_call.1} parent=5 // pred_fallthru
        _
      %p177 = scmp.lt.s32.totalorder %s14, 2
      // Predicated region
      $region29: #{tpu_custom_call.1} parent=5 // pred_check
        %p178 = pneg %p177
      $region30: #{tpu_custom_call.1} parent=5 // pred_check_branch
        %180 = sbr.rel (%p178) target = $region32
      $region31: #{tpu_custom_call.1} parent=5 // pred_region
        // Predicated region
        $region33: #{tpu_custom_call.1} parent=31 // pred_check
          %p181 = pneg %p34
        $region34: #{tpu_custom_call.1} parent=31 // pred_check_branch
          %183 = sbr.rel (%p181) target = $region36
        $region35: #{tpu_custom_call.1} parent=31 // pred_region
          %s184 = smul.u32 16, %s14
          %p185 = scmp.lt.s32.totalorder %s184, 31
          %s186 = scalar_select %p185, %s184, 31
          %s187 = smul.addr %s186, 8
          %s188 = scalar_lea.vmem %s0, %s187
          %s189 = smul.u32 16, %s14
        $region36: #{tpu_custom_call.1} parent=31 // pred_fallthru
          _
      $region32: #{tpu_custom_call.1} parent=5 // pred_fallthru
        _
      %p190 = scmp.le.s32.totalorder 1, %s14
      %p191 = scmp.lt.s32.totalorder %s14, 3
      %p192 = pnand %p190, %p191
      %p193 = pneg %p192
      // Predicated region
      $region37: #{tpu_custom_call.1} parent=5 // pred_check
        _
      $region38: #{tpu_custom_call.1} parent=5 // pred_check_branch
        %195 = sbr.rel (%p192) target = $region40
      $region39: #{tpu_custom_call.1} parent=5 // pred_region
        %s196 = ssub.s32 %s14, 1
        %s197 = smul.u32 16, %s19
        %p198 = scmp.lt.s32.totalorder %s197, 31
        %s199 = scalar_select %p198, %s197, 31
        %s200 = smul.addr %s199, 8
        %s201 = scalar_lea.vmem %s0, %s200
        %p202 = pneg %p40
        %p203 = pneg %p37
        %p204 = pneg %p61
        %p205 = pneg %p58
        %p206 = pneg %p82
        %p207 = pneg %p79
        %p208 = pneg %p103
        %p209 = pneg %p100
        %p210 = pneg %p124
        %p211 = pneg %p121
        %p212 = pneg %p150
        %p213 = pneg %p147
        %s214 = sand.u32 %s137, 1
        %s215 = scalar_lea.sflag [#allocation3], %s214
        %s216 = sand.u32 %s137, 1
        %s217 = smul.addr %s216, 128
        %s218 = scalar_lea.vmem [#allocation2], %s217
        %s219 = smul.u32 16, %s19
        %p220 = scmp.lt.s32.totalorder %s219, 31
        %s221 = scalar_select %p220, %s219, 31
        %s222 = smul.addr %s221, 8
        %s223 = scalar_lea.vmem %s0, %s222
        %s224 = smul.u32 16, %s19
        %s225 = smul.u32 16, %s19
        %v227 = vld [vmem:[%s223] sm:$0xff]
        %v228 = vld [vmem:[%s223 + $0x8] sm:$0xff]
        %v229 = vld [vmem:[%s223 + $0x10] sm:$0xff]
        %v230 = vld [vmem:[%s223 + $0x18] sm:$0xff]
        %v231 = vld [vmem:[%s223 + $0x20] sm:$0xff]
        %v232 = vld [vmem:[%s223 + $0x28] sm:$0xff]
        %v233 = vld [vmem:[%s223 + $0x30] sm:$0xff]
        %v234 = vld [vmem:[%s223 + $0x38] sm:$0xff]
        %v235 = vld [vmem:[%s223 + $0x40] sm:$0xff]
        %v236 = vld [vmem:[%s223 + $0x48] sm:$0xff]
        %v237 = vld [vmem:[%s223 + $0x50] sm:$0xff]
        %v238 = vld [vmem:[%s223 + $0x58] sm:$0xff]
        %v239 = vld [vmem:[%s223 + $0x60] sm:$0xff]
        %v240 = vld [vmem:[%s223 + $0x68] sm:$0xff]
        %v241 = vld [vmem:[%s223 + $0x70] sm:$0xff]
        %v242 = vld [vmem:[%s223 + $0x78] sm:$0xff]
        %v243 = vpack.c.bf16 %v228, %v227
        %v244 = vpack.c.bf16 %v230, %v229
        %v245 = vpack.c.bf16 %v232, %v231
        %v246 = vpack.c.bf16 %v234, %v233
        %v247 = vpack.c.bf16 %v236, %v235
        %v248 = vpack.c.bf16 %v238, %v237
        %v249 = vpack.c.bf16 %v240, %v239
        %v250 = vpack.c.bf16 %v242, %v241
        %v251 = vld [vmem:[%s1] sm:$0xf]
        %v252 = vld [vmem:[%s1 + $0x4] sm:$0xf]
        %v253 = vld [vmem:[%s1 + $0x8] sm:$0xf]
        %v254 = vld [vmem:[%s1 + $0xc] sm:$0xf]
        %v255 = vld [vmem:[%s2] sm:$0x1]
        %v257 = vlaneseq
        %v258 = vshrl.u32 %v257, 7
        %v259 = vsub.s32 0, %v258
        %v260 = vrot.slane %v255, %v259
        %v266 = vunpack.c.l.b16 %v251
        %v267 = vunpack.c.l.b16 %v252
        %v268 = vunpack.c.l.b16 %v253
        %v269 = vunpack.c.l.b16 %v254
        %v270 = vpack.c.b16 %v267, %v266
        %v271 = vpack.c.b16 %v269, %v268
        %vm274 = vcmask 261120
        %v276 = vsel %vm274, %v243, 0
        %v279 = vsel %vm274, %v244, 0
        %v282 = vsel %vm274, %v245, 0
        %v285 = vsel %vm274, %v246, 0
        %v288 = vsel %vm274, %v247, 0
        %v291 = vsel %vm274, %v248, 0
        %v294 = vsel %vm274, %v249, 0
        %v297 = vsel %vm274, %v250, 0
        %299 = vmatprep.subr.bf16.mxu0 0
        %300 = vmatpush1.bf16.msra.mxu0 %v270
        %301 = vmatprep.subr.bf16.mxu0 0
        %302 = vmatpush1.bf16.msra.mxu0 %v271
        %303 = vmatprep.subr.bf16.mxu0 0
        %304 = vmatpush1.bf16.msra.mxu0 0
        %305 = vmatprep.subr.bf16.mxu0 0
        %306 = vmatpush1.bf16.msra.mxu0 0
        %307 = vmatprep.subr.bf16.mxu0 0
        %308 = vmatpush1.bf16.msra.mxu0 0
        %309 = vmatprep.subr.bf16.mxu0 0
        %310 = vmatpush1.bf16.msra.mxu0 0
        %311 = vmatprep.subr.bf16.mxu0 0
        %312 = vmatpush1.bf16.msra.mxu0 0
        %313 = vmatprep.subr.bf16.mxu0 0
        %314 = vmatpush1.bf16.msra.mxu0 0
        %315 = vmatprep.subr.bf16.mxu0 0
        %316 = vmatpush1.bf16.msra.mxu0 0
        %317 = vmatprep.subr.bf16.mxu0 0
        %318 = vmatpush1.bf16.msra.mxu0 0
        %319 = vmatprep.subr.bf16.mxu0 0
        %320 = vmatpush1.bf16.msra.mxu0 0
        %321 = vmatprep.subr.bf16.mxu0 0
        %322 = vmatpush1.bf16.msra.mxu0 0
        %323 = vmatprep.subr.bf16.mxu0 0
        %324 = vmatpush1.bf16.msra.mxu0 0
        %325 = vmatprep.subr.bf16.mxu0 0
        %326 = vmatpush1.bf16.msra.mxu0 0
        %327 = vmatprep.subr.bf16.mxu0 0
        %328 = vmatpush1.bf16.msra.mxu0 0
        %329 = vmatprep.subr.bf16.mxu0 0
        %330 = vmatpush1.bf16.msra.mxu0 0
        %331 = vmatprep.mubr.bf16.mxu0 0
        %332 = vmatmul.mubr.bf16.gmra.mrb[0].mxu0 %v276
        %v333 = vpop.f32.mrb[0].mxu0
        %v334 = vadd.f32 %v260, %v333
        %v335 = vpop.f32.mrb[0].mxu0
        %v336 = vpop.f32.mrb[0].mxu0
        %v337 = vadd.f32 %v260, %v336
        %v338 = vpop.f32.mrb[0].mxu0
        %339 = vmatprep.mubr.bf16.mxu0 0
        %340 = vmatmul.mubr.bf16.gmra.mrb[0].mxu0 %v279
        %v341 = vpop.f32.mrb[0].mxu0
        %v342 = vadd.f32 %v260, %v341
        %v343 = vpop.f32.mrb[0].mxu0
        %v344 = vpop.f32.mrb[0].mxu0
        %v345 = vadd.f32 %v260, %v344
        %v346 = vpop.f32.mrb[0].mxu0
        %347 = vmatprep.mubr.bf16.mxu0 0
        %348 = vmatmul.mubr.bf16.gmra.mrb[0].mxu0 %v282
        %v349 = vpop.f32.mrb[0].mxu0
        %v350 = vadd.f32 %v260, %v349
        %v351 = vpop.f32.mrb[0].mxu0
        %v352 = vpop.f32.mrb[0].mxu0
        %v353 = vadd.f32 %v260, %v352
        %v354 = vpop.f32.mrb[0].mxu0
        %355 = vmatprep.mubr.bf16.mxu0 0
        %356 = vmatmul.mubr.bf16.gmra.mrb[0].mxu0 %v285
        %v357 = vpop.f32.mrb[0].mxu0
        %v358 = vadd.f32 %v260, %v357
        %v359 = vpop.f32.mrb[0].mxu0
        %v360 = vpop.f32.mrb[0].mxu0
        %v361 = vadd.f32 %v260, %v360
        %v362 = vpop.f32.mrb[0].mxu0
        %363 = vmatprep.mubr.bf16.mxu0 0
        %364 = vmatmul.mubr.bf16.gmra.mrb[0].mxu0 %v288
        %v365 = vpop.f32.mrb[0].mxu0
        %v366 = vadd.f32 %v260, %v365
        %v367 = vpop.f32.mrb[0].mxu0
        %v368 = vpop.f32.mrb[0].mxu0
        %v369 = vadd.f32 %v260, %v368
        %v370 = vpop.f32.mrb[0].mxu0
        %371 = vmatprep.mubr.bf16.mxu0 0
        %372 = vmatmul.mubr.bf16.gmra.mrb[0].mxu0 %v291
        %v373 = vpop.f32.mrb[0].mxu0
        %v374 = vadd.f32 %v260, %v373
        %v375 = vpop.f32.mrb[0].mxu0
        %v376 = vpop.f32.mrb[0].mxu0
        %v377 = vadd.f32 %v260, %v376
        %v378 = vpop.f32.mrb[0].mxu0
        %379 = vmatprep.mubr.bf16.mxu0 0
        %380 = vmatmul.mubr.bf16.gmra.mrb[0].mxu0 %v294
        %v381 = vpop.f32.mrb[0].mxu0
        %v382 = vadd.f32 %v260, %v381
        %v383 = vpop.f32.mrb[0].mxu0
        %v384 = vpop.f32.mrb[0].mxu0
        %v385 = vadd.f32 %v260, %v384
        %v386 = vpop.f32.mrb[0].mxu0
        %387 = vmatprep.mubr.bf16.mxu0 0
        %388 = vmatmul.mubr.bf16.gmra.mrb[0].mxu0 %v297
        %v389 = vpop.f32.mrb[0].mxu0
        %v390 = vadd.f32 %v260, %v389
        %v391 = vpop.f32.mrb[0].mxu0
        %v392 = vpop.f32.mrb[0].mxu0
        %v393 = vadd.f32 %v260, %v392
        %v394 = vpop.f32.mrb[0].mxu0
        %395 = vdwg.mxu0
        %v396 = vmax.f32 %v334, 0.0
        %v397 = vmax.f32 %v337, 0.0
        %v398 = vmax.f32 %v342, 0.0
        %v399 = vmax.f32 %v345, 0.0
        %v400 = vmax.f32 %v350, 0.0
        %v401 = vmax.f32 %v353, 0.0
        %v402 = vmax.f32 %v358, 0.0
        %v403 = vmax.f32 %v361, 0.0
        %v404 = vmax.f32 %v366, 0.0
        %v405 = vmax.f32 %v369, 0.0
        %v406 = vmax.f32 %v374, 0.0
        %v407 = vmax.f32 %v377, 0.0
        %v408 = vmax.f32 %v382, 0.0
        %v409 = vmax.f32 %v385, 0.0
        %v410 = vmax.f32 %v390, 0.0
        %v411 = vmax.f32 %v393, 0.0
        %v412 = vpack.c.bf16 %v397, %v396
        %v413 = vpack.c.bf16 %v399, %v398
        %v414 = vpack.c.bf16 %v401, %v400
        %v415 = vpack.c.bf16 %v403, %v402
        %v416 = vpack.c.bf16 %v405, %v404
        %v417 = vpack.c.bf16 %v407, %v406
        %v418 = vpack.c.bf16 %v409, %v408
        %v419 = vpack.c.bf16 %v411, %v410
        %v420 = vld [vmem:[%s3] sm:$0xf]
        %v421 = vld [vmem:[%s3 + $0x4] sm:$0xf]
        %v422 = vld [vmem:[%s3 + $0x8] sm:$0xf]
        %v423 = vld [vmem:[%s3 + $0xc] sm:$0xf]
        %v424 = vld [vmem:[%s3 + $0x10] sm:$0xf]
        %v425 = vld [vmem:[%s3 + $0x14] sm:$0xf]
        %v426 = vld [vmem:[%s3 + $0x18] sm:$0xf]
        %v427 = vld [vmem:[%s3 + $0x1c] sm:$0xf]
        %v428 = vld [vmem:[%s3 + $0x20] sm:$0xf]
        %v429 = vld [vmem:[%s3 + $0x24] sm:$0xf]
        %v430 = vld [vmem:[%s3 + $0x28] sm:$0xf]
        %v431 = vld [vmem:[%s3 + $0x2c] sm:$0xf]
        %v432 = vld [vmem:[%s3 + $0x30] sm:$0xf]
        %v433 = vld [vmem:[%s3 + $0x34] sm:$0xf]
        %v434 = vld [vmem:[%s3 + $0x38] sm:$0xf]
        %v435 = vld [vmem:[%s3 + $0x3c] sm:$0xf]
        %v436 = vld [vmem:[%s4] sm:$0x1]
        %v438 = vlaneseq
        %v439 = vshrl.u32 %v438, 7
        %v440 = vsub.s32 0, %v439
        %v441 = vrot.slane %v436, %v440
        %v459 = vunpack.c.l.b16 %v420
        %v460 = vunpack.c.l.b16 %v421
        %v461 = vunpack.c.l.b16 %v422
        %v462 = vunpack.c.l.b16 %v423
        %v463 = vunpack.c.l.b16 %v424
        %v464 = vunpack.c.l.b16 %v425
        %v465 = vunpack.c.l.b16 %v426
        %v466 = vunpack.c.l.b16 %v427
        %v467 = vunpack.c.l.b16 %v428
        %v468 = vunpack.c.l.b16 %v429
        %v469 = vunpack.c.l.b16 %v430
        %v470 = vunpack.c.l.b16 %v431
        %v471 = vunpack.c.l.b16 %v432
        %v472 = vunpack.c.l.b16 %v433
        %v473 = vunpack.c.l.b16 %v434
        %v474 = vunpack.c.l.b16 %v435
        %v475 = vpack.c.b16 %v460, %v459
        %v476 = vpack.c.b16 %v462, %v461
        %v477 = vpack.c.b16 %v464, %v463
        %v478 = vpack.c.b16 %v466, %v465
        %v479 = vpack.c.b16 %v468, %v467
        %v480 = vpack.c.b16 %v470, %v469
        %v481 = vpack.c.b16 %v472, %v471
        %v482 = vpack.c.b16 %v474, %v473
        %491 = vmatprep.subr.bf16.mxu0 0
        %492 = vmatpush1.bf16.msra.mxu0 %v475
        %493 = vmatprep.subr.bf16.mxu0 0
        %494 = vmatpush1.bf16.msra.mxu0 %v476
        %495 = vmatprep.subr.bf16.mxu0 0
        %496 = vmatpush1.bf16.msra.mxu0 %v477
        %497 = vmatprep.subr.bf16.mxu0 0
        %498 = vmatpush1.bf16.msra.mxu0 %v478
        %499 = vmatprep.subr.bf16.mxu0 0
        %500 = vmatpush1.bf16.msra.mxu0 %v479
        %501 = vmatprep.subr.bf16.mxu0 0
        %502 = vmatpush1.bf16.msra.mxu0 %v480
        %503 = vmatprep.subr.bf16.mxu0 0
        %504 = vmatpush1.bf16.msra.mxu0 %v481
        %505 = vmatprep.subr.bf16.mxu0 0
        %506 = vmatpush1.bf16.msra.mxu0 %v482
        %507 = vmatprep.subr.bf16.mxu0 0
        %508 = vmatpush1.bf16.msra.mxu0 0
        %509 = vmatprep.subr.bf16.mxu0 0
        %510 = vmatpush1.bf16.msra.mxu0 0
        %511 = vmatprep.subr.bf16.mxu0 0
        %512 = vmatpush1.bf16.msra.mxu0 0
        %513 = vmatprep.subr.bf16.mxu0 0
        %514 = vmatpush1.bf16.msra.mxu0 0
        %515 = vmatprep.subr.bf16.mxu0 0
        %516 = vmatpush1.bf16.msra.mxu0 0
        %517 = vmatprep.subr.bf16.mxu0 0
        %518 = vmatpush1.bf16.msra.mxu0 0
        %519 = vmatprep.subr.bf16.mxu0 0
        %520 = vmatpush1.bf16.msra.mxu0 0
        %521 = vmatprep.subr.bf16.mxu0 0
        %522 = vmatpush1.bf16.msra.mxu0 0
        %523 = vmatprep.mubr.bf16.mxu0 0
        %524 = vmatmul.mubr.bf16.gmra.mrb[0].mxu0 %v412
        %v525 = vpop.f32.mrb[0].mxu0
        %v526 = vadd.f32 %v441, %v525
        %v527 = vpop.f32.mrb[0].mxu0
        %v528 = vpop.f32.mrb[0].mxu0
        %v529 = vadd.f32 %v441, %v528
        %v530 = vpop.f32.mrb[0].mxu0
        %531 = vmatprep.mubr.bf16.mxu0 0
        %532 = vmatmul.mubr.bf16.gmra.mrb[0].mxu0 %v413
        %v533 = vpop.f32.mrb[0].mxu0
        %v534 = vadd.f32 %v441, %v533
        %v535 = vpop.f32.mrb[0].mxu0
        %v536 = vpop.f32.mrb[0].mxu0
        %v537 = vadd.f32 %v441, %v536
        %v538 = vpop.f32.mrb[0].mxu0
        %539 = vmatprep.mubr.bf16.mxu0 0
        %540 = vmatmul.mubr.bf16.gmra.mrb[0].mxu0 %v414
        %v541 = vpop.f32.mrb[0].mxu0
        %v542 = vadd.f32 %v441, %v541
        %v543 = vpop.f32.mrb[0].mxu0
        %v544 = vpop.f32.mrb[0].mxu0
        %v545 = vadd.f32 %v441, %v544
        %v546 = vpop.f32.mrb[0].mxu0
        %547 = vmatprep.mubr.bf16.mxu0 0
        %548 = vmatmul.mubr.bf16.gmra.mrb[0].mxu0 %v415
        %v549 = vpop.f32.mrb[0].mxu0
        %v550 = vadd.f32 %v441, %v549
        %v551 = vpop.f32.mrb[0].mxu0
        %v552 = vpop.f32.mrb[0].mxu0
        %v553 = vadd.f32 %v441, %v552
        %v554 = vpop.f32.mrb[0].mxu0
        %555 = vmatprep.mubr.bf16.mxu0 0
        %556 = vmatmul.mubr.bf16.gmra.mrb[0].mxu0 %v416
        %v557 = vpop.f32.mrb[0].mxu0
        %v558 = vadd.f32 %v441, %v557
        %v559 = vpop.f32.mrb[0].mxu0
        %v560 = vpop.f32.mrb[0].mxu0
        %v561 = vadd.f32 %v441, %v560
        %v562 = vpop.f32.mrb[0].mxu0
        %563 = vmatprep.mubr.bf16.mxu0 0
        %564 = vmatmul.mubr.bf16.gmra.mrb[0].mxu0 %v417
        %v565 = vpop.f32.mrb[0].mxu0
        %v566 = vadd.f32 %v441, %v565
        %v567 = vpop.f32.mrb[0].mxu0
        %v568 = vpop.f32.mrb[0].mxu0
        %v569 = vadd.f32 %v441, %v568
        %v570 = vpop.f32.mrb[0].mxu0
        %571 = vmatprep.mubr.bf16.mxu0 0
        %572 = vmatmul.mubr.bf16.gmra.mrb[0].mxu0 %v418
        %v573 = vpop.f32.mrb[0].mxu0
        %v574 = vadd.f32 %v441, %v573
        %v575 = vpop.f32.mrb[0].mxu0
        %v576 = vpop.f32.mrb[0].mxu0
        %v577 = vadd.f32 %v441, %v576
        %v578 = vpop.f32.mrb[0].mxu0
        %579 = vmatprep.mubr.bf16.mxu0 0
        %580 = vmatmul.mubr.bf16.gmra.mrb[0].mxu0 %v419
        %v581 = vpop.f32.mrb[0].mxu0
        %v582 = vadd.f32 %v441, %v581
        %v583 = vpop.f32.mrb[0].mxu0
        %v584 = vpop.f32.mrb[0].mxu0
        %v585 = vadd.f32 %v441, %v584
        %v586 = vpop.f32.mrb[0].mxu0
        %587 = vdwg.mxu0
        %588 = vmax.xlane.f32.xlu0 %v526
        %v589 = vpop.xlane.xlu0 %588
        %590 = vmax.xlane.f32.xlu0 %v529
        %v591 = vpop.xlane.xlu0 %590
        %592 = vmax.xlane.f32.xlu0 %v534
        %v593 = vpop.xlane.xlu0 %592
        %594 = vmax.xlane.f32.xlu0 %v537
        %v595 = vpop.xlane.xlu0 %594
        %596 = vmax.xlane.f32.xlu0 %v542
        %v597 = vpop.xlane.xlu0 %596
        %598 = vmax.xlane.f32.xlu0 %v545
        %v599 = vpop.xlane.xlu0 %598
        %600 = vmax.xlane.f32.xlu0 %v550
        %v601 = vpop.xlane.xlu0 %600
        %602 = vmax.xlane.f32.xlu0 %v553
        %v603 = vpop.xlane.xlu0 %602
        %604 = vmax.xlane.f32.xlu0 %v558
        %v605 = vpop.xlane.xlu0 %604
        %606 = vmax.xlane.f32.xlu0 %v561
        %v607 = vpop.xlane.xlu0 %606
        %608 = vmax.xlane.f32.xlu0 %v566
        %v609 = vpop.xlane.xlu0 %608
        %610 = vmax.xlane.f32.xlu0 %v569
        %v611 = vpop.xlane.xlu0 %610
        %612 = vmax.xlane.f32.xlu0 %v574
        %v613 = vpop.xlane.xlu0 %612
        %614 = vmax.xlane.f32.xlu0 %v577
        %v615 = vpop.xlane.xlu0 %614
        %616 = vmax.xlane.f32.xlu0 %v582
        %v617 = vpop.xlane.xlu0 %616
        %618 = vmax.xlane.f32.xlu0 %v585
        %v619 = vpop.xlane.xlu0 %618
        %v620 = vsub.f32 %v526, %v589
        %v621 = vsub.f32 %v529, %v591
        %v622 = vsub.f32 %v534, %v593
        %v623 = vsub.f32 %v537, %v595
        %v624 = vsub.f32 %v542, %v597
        %v625 = vsub.f32 %v545, %v599
        %v626 = vsub.f32 %v550, %v601
        %v627 = vsub.f32 %v553, %v603
        %v628 = vsub.f32 %v558, %v605
        %v629 = vsub.f32 %v561, %v607
        %v630 = vsub.f32 %v566, %v609
        %v631 = vsub.f32 %v569, %v611
        %v632 = vsub.f32 %v574, %v613
        %v633 = vsub.f32 %v577, %v615
        %v634 = vsub.f32 %v582, %v617
        %v635 = vsub.f32 %v585, %v619
        %v636 = vmul.f32 %v620, 1.442695
        %v637 = vpow.pop %v636
        %v638 = vmul.f32 %v621, 1.442695
        %v639 = vpow.pop %v638
        %v640 = vmul.f32 %v622, 1.442695
        %v641 = vpow.pop %v640
        %v642 = vmul.f32 %v623, 1.442695
        %v643 = vpow.pop %v642
        %v644 = vmul.f32 %v624, 1.442695
        %v645 = vpow.pop %v644
        %v646 = vmul.f32 %v625, 1.442695
        %v647 = vpow.pop %v646
        %v648 = vmul.f32 %v626, 1.442695
        %v649 = vpow.pop %v648
        %v650 = vmul.f32 %v627, 1.442695
        %v651 = vpow.pop %v650
        %v652 = vmul.f32 %v628, 1.442695
        %v653 = vpow.pop %v652
        %v654 = vmul.f32 %v629, 1.442695
        %v655 = vpow.pop %v654
        %v656 = vmul.f32 %v630, 1.442695
        %v657 = vpow.pop %v656
        %v658 = vmul.f32 %v631, 1.442695
        %v659 = vpow.pop %v658
        %v660 = vmul.f32 %v632, 1.442695
        %v661 = vpow.pop %v660
        %v662 = vmul.f32 %v633, 1.442695
        %v663 = vpow.pop %v662
        %v664 = vmul.f32 %v634, 1.442695
        %v665 = vpow.pop %v664
        %v666 = vmul.f32 %v635, 1.442695
        %v667 = vpow.pop %v666
        %668 = vadd.xlane.f32.xlu0 %v637
        %v669 = vpop.xlane.xlu0 %668
        %670 = vadd.xlane.f32.xlu0 %v639
        %v671 = vpop.xlane.xlu0 %670
        %672 = vadd.xlane.f32.xlu0 %v641
        %v673 = vpop.xlane.xlu0 %672
        %674 = vadd.xlane.f32.xlu0 %v643
        %v675 = vpop.xlane.xlu0 %674
        %676 = vadd.xlane.f32.xlu0 %v645
        %v677 = vpop.xlane.xlu0 %676
        %678 = vadd.xlane.f32.xlu0 %v647
        %v679 = vpop.xlane.xlu0 %678
        %680 = vadd.xlane.f32.xlu0 %v649
        %v681 = vpop.xlane.xlu0 %680
        %682 = vadd.xlane.f32.xlu0 %v651
        %v683 = vpop.xlane.xlu0 %682
        %684 = vadd.xlane.f32.xlu0 %v653
        %v685 = vpop.xlane.xlu0 %684
        %686 = vadd.xlane.f32.xlu0 %v655
        %v687 = vpop.xlane.xlu0 %686
        %688 = vadd.xlane.f32.xlu0 %v657
        %v689 = vpop.xlane.xlu0 %688
        %690 = vadd.xlane.f32.xlu0 %v659
        %v691 = vpop.xlane.xlu0 %690
        %692 = vadd.xlane.f32.xlu0 %v661
        %v693 = vpop.xlane.xlu0 %692
        %694 = vadd.xlane.f32.xlu0 %v663
        %v695 = vpop.xlane.xlu0 %694
        %696 = vadd.xlane.f32.xlu0 %v665
        %v697 = vpop.xlane.xlu0 %696
        %698 = vadd.xlane.f32.xlu0 %v667
        %v699 = vpop.xlane.xlu0 %698
        %v700 = vrcp.pop %v669
        %v701 = vmul.f32 %v637, %v700
        %v702 = vrcp.pop %v671
        %v703 = vmul.f32 %v639, %v702
        %v704 = vrcp.pop %v673
        %v705 = vmul.f32 %v641, %v704
        %v706 = vrcp.pop %v675
        %v707 = vmul.f32 %v643, %v706
        %v708 = vrcp.pop %v677
        %v709 = vmul.f32 %v645, %v708
        %v710 = vrcp.pop %v679
        %v711 = vmul.f32 %v647, %v710
        %v712 = vrcp.pop %v681
        %v713 = vmul.f32 %v649, %v712
        %v714 = vrcp.pop %v683
        %v715 = vmul.f32 %v651, %v714
        %v716 = vrcp.pop %v685
        %v717 = vmul.f32 %v653, %v716
        %v718 = vrcp.pop %v687
        %v719 = vmul.f32 %v655, %v718
        %v720 = vrcp.pop %v689
        %v721 = vmul.f32 %v657, %v720
        %v722 = vrcp.pop %v691
        %v723 = vmul.f32 %v659, %v722
        %v724 = vrcp.pop %v693
        %v725 = vmul.f32 %v661, %v724
        %v726 = vrcp.pop %v695
        %v727 = vmul.f32 %v663, %v726
        %v728 = vrcp.pop %v697
        %v729 = vmul.f32 %v665, %v728
        %v730 = vrcp.pop %v699
        %v731 = vmul.f32 %v667, %v730
        %732 = vst [vmem:[%s218] sm:$0xff] %v701
        %733 = vst [vmem:[%s218 + $0x8] sm:$0xff] %v703
        %734 = vst [vmem:[%s218 + $0x10] sm:$0xff] %v705
        %735 = vst [vmem:[%s218 + $0x18] sm:$0xff] %v707
        %736 = vst [vmem:[%s218 + $0x20] sm:$0xff] %v709
        %737 = vst [vmem:[%s218 + $0x28] sm:$0xff] %v711
        %738 = vst [vmem:[%s218 + $0x30] sm:$0xff] %v713
        %739 = vst [vmem:[%s218 + $0x38] sm:$0xff] %v715
        %740 = vst [vmem:[%s218 + $0x40] sm:$0xff] %v717
        %741 = vst [vmem:[%s218 + $0x48] sm:$0xff] %v719
        %742 = vst [vmem:[%s218 + $0x50] sm:$0xff] %v721
        %743 = vst [vmem:[%s218 + $0x58] sm:$0xff] %v723
        %744 = vst [vmem:[%s218 + $0x60] sm:$0xff] %v725
        %745 = vst [vmem:[%s218 + $0x68] sm:$0xff] %v727
        %746 = vst [vmem:[%s218 + $0x70] sm:$0xff] %v729
        %747 = vst [vmem:[%s218 + $0x78] sm:$0xff] %v731
        %s748 = sand.u32 %s137, 1
        %s749 = scalar_lea.sflag [#allocation3], %s748
        %s750 = sand.u32 %s137, 1
        %s751 = smul.addr %s750, 128
        %s752 = scalar_lea.vmem [#allocation2], %s751
        // Predicated region
        $region41: #{tpu_custom_call.1} parent=39 // pred_check
          %p753 = pneg %p147
        $region42: #{tpu_custom_call.1} parent=39 // pred_check_branch
          %755 = sbr.rel (%p753) target = $region44
        $region43: #{tpu_custom_call.1} parent=39 // pred_region
          %s756 = smul.u32 16, %s19
          %s758 = ssub.s32 2048, 2048
          %759 = vsyncadd %s749, %s758
          %s760 = smul.addr %s756, 128
          %s761 = scalar_lea.hbm %s5, %s760
          %s762 = sshll.u32 %s752, 4
          %s763 = int_to_ptr.vmem [resolvable:$true] %s762
          %768 = dma.vmem_to_hbm [thread:$0]  %s763, 2048, %s761, %s749, 128, 128, 8
        $region44: #{tpu_custom_call.1} parent=39 // pred_fallthru
          _
      $region40: #{tpu_custom_call.1} parent=5 // pred_fallthru
        _
      %p769 = scmp.le.s32.totalorder 2, %s14
      // Predicated region
      $region45: #{tpu_custom_call.1} parent=5 // pred_check
        %p770 = pneg %p769
      $region46: #{tpu_custom_call.1} parent=5 // pred_check_branch
        %772 = sbr.rel (%p770) target = $region48
      $region47: #{tpu_custom_call.1} parent=5 // pred_region
        %s773 = ssub.s32 %s14, 2
        // Predicated region
        $region49: #{tpu_custom_call.1} parent=47 // pred_check
          %p774 = pneg %p153
        $region50: #{tpu_custom_call.1} parent=47 // pred_check_branch
          %776 = sbr.rel (%p774) target = $region52
        $region51: #{tpu_custom_call.1} parent=47 // pred_region
          %s777 = sand.u32 %s138, 1
          %s778 = scalar_lea.sflag [#allocation3], %s777
          %s779 = sand.u32 %s138, 1
          %s780 = smul.addr %s779, 128
          %s781 = scalar_lea.vmem [#allocation2], %s780
          %782 = dma.done %s778, 2048
        $region52: #{tpu_custom_call.1} parent=47 // pred_fallthru
          _
      $region48: #{tpu_custom_call.1} parent=5 // pred_fallthru
        _
    $region6: #{tpu_custom_call.1} parent=1 // loop_footer
      %s18 = sadd.s32 1, %s14
    $region7: #{tpu_custom_call.1} parent=1 // loop_footer_branch
      %13 = sbr.rel target = $region3
    $region8: #{tpu_custom_call.1} parent=1 // loop_exit
      _
    %783 = vsyncpa [#allocation3], 1
    %s784 = scalar_lea.sflag [#allocation3], 1
    %785 = vsyncpa %s784, 1

</llo_original>
